<compile_context>
chip_gen: v5e
topology: v5e:2x2
jax: 0.10.0
libtpu: 0.0.40
codegen_flags: <defaults>
</compile_context>

<pallas_src>
import math

import numpy as np
import jax
import jax.numpy as jnp
from jax.experimental import pallas as pl
from jax.experimental.pallas import tpu as pltpu


# ----------------------------- small helpers --------------------------------

def _round_up(a, b):
    return ((a + b - 1) // b) * b


def _cdiv(a, b):
    return (a + b - 1) // b


def _vmem_capacity_bytes():
    """Per-core VMEM capacity; conservative 64 MiB (v7x) fallback."""
    try:
        return int(pltpu.get_tpu_info().vmem_capacity_bytes)
    except Exception:
        return 64 * 1024 * 1024


def _choose_tiles(n, d_in, d_out_p, x_itemsize, out_itemsize, weight_bytes):
    """Pick the token tile TM and the scoped-VMEM limit.

    Budget = 3/4 of physical VMEM, minus 2x the resident weight/bias buffers
    (constant-index blocks are not re-DMA'd across steps, but the pipeliner
    may still allocate two copies), minus slack for internal scratch. The
    remainder is split between double-buffered x tiles (native dtype) and
    double-buffered output tiles (output dtype).
    """
    cap = _vmem_capacity_bytes()
    vmem_limit = min((3 * cap) // 4, 100 * 1024 * 1024)
    resident = 2 * weight_bytes
    slack = 2 * 1024 * 1024
    tile_budget = max(vmem_limit - resident - slack, 4 * 1024 * 1024)

    per_row = 2 * d_in * x_itemsize + 2 * d_out_p * out_itemsize
    tm = tile_budget // max(per_row, 1)
    tm = max(8, min(1024, (tm // 8) * 8))            # sublane-aligned, capped
    tm = min(tm, _round_up(_cdiv(n, 4), 8))          # >= ~4 grid steps (megacore)
    tm = min(tm, _round_up(n, 8))                    # never bigger than the input
    return tm, vmem_limit


# ------------------------------- kernel --------------------------------------

def _hydra_kernel(x_ref, wd_ref, wu_ref, b_ref, o_ref):
    # x_ref:  [TM, D_in]       streamed token tile (native dtype)
    # wd_ref: [D_in, Hp]       resident, Hp = H rounded up to 128 lanes
    # wu_ref: [Hp, D_out_p]    resident, already scaled by `scale`
    # b_ref:  [1, D_out_p]     fused (b_down @ W_up + b_up) * scale, f32
    # o_ref:  [TM, D_out_p]    lane-dense output tile
    x = x_ref[...].astype(wd_ref.dtype)              # in-kernel cast, no extra HBM pass
    h = jnp.dot(x, wd_ref[...], preferred_element_type=jnp.float32)
    # dropout(p=0.0) is the identity.
    y = jnp.dot(h.astype(wu_ref.dtype), wu_ref[...],
                preferred_element_type=jnp.float32)
    o_ref[...] = (y + b_ref[...]).astype(o_ref.dtype)


# ----------------------------- host wrappers ---------------------------------

def prepare_hydra_params(w_down, b_down, w_up, b_up, scale=1.0,
                         compute_dtype=jnp.bfloat16):
    """One-time weight preparation (hoist out of the per-call path).

    Folds `scale` and both biases into the weights:
        W_up' = W_up * scale,  b' = (b_down @ W_up + b_up) * scale
    pads H and D_out up to multiples of 128 lanes (exact, zero-padded), and
    casts the weight matrices to `compute_dtype`. Returns a dict to pass to
    hydra_apply(). Call once per parameter set and reuse.
    """
    D_in, H = w_down.shape
    D_out = w_up.shape[1]
    Hp = _round_up(H, 128)
    D_out_p = _round_up(D_out, 128)
    cdt = jnp.dtype(compute_dtype)

    wd_f32 = jnp.asarray(w_down, jnp.float32)
    wu_f32 = jnp.asarray(w_up, jnp.float32)
    scale_f32 = jnp.float32(scale)

    b_fused = (jnp.asarray(b_down, jnp.float32) @ wu_f32
               + jnp.asarray(b_up, jnp.float32)) * scale_f32

    wd_p = jnp.zeros((D_in, Hp), cdt).at[:, :H].set(wd_f32.astype(cdt))
    wu_p = jnp.zeros((Hp, D_out_p), cdt).at[:H, :D_out].set(
        (wu_f32 * scale_f32).astype(cdt))
    b_p = jnp.zeros((1, D_out_p), jnp.float32).at[0, :D_out].set(b_fused)

    return {"wd": wd_p, "wu": wu_p, "b": b_p, "D_out": D_out}


def hydra_apply(x, params):
    """Apply the Hydra adapter to x[..., D_in] using prepared params."""
    wd, wu, b = params["wd"], params["wu"], params["b"]
    D_in, Hp = wd.shape
    D_out_p = wu.shape[1]
    D_out = params["D_out"]

    lead = x.shape[:-1]
    N = int(np.prod(lead)) if lead else 1
    x2 = x.reshape(N, D_in)
    out_dtype = x.dtype

    weight_bytes = (wd.size * wd.dtype.itemsize
                    + wu.size * wu.dtype.itemsize
                    + b.size * b.dtype.itemsize)
    TM, vmem_limit = _choose_tiles(
        N, D_in, D_out_p,
        x_itemsize=jnp.dtype(x.dtype).itemsize,
        out_itemsize=jnp.dtype(out_dtype).itemsize,
        weight_bytes=weight_bytes,
    )
    grid = (_cdiv(N, TM),)

    out = pl.pallas_call(
        _hydra_kernel,
        out_shape=jax.ShapeDtypeStruct((N, D_out_p), out_dtype),
        grid_spec=pltpu.PrefetchScalarGridSpec(
            num_scalar_prefetch=0,
            grid=grid,
            in_specs=[
                pl.BlockSpec((TM, D_in), lambda i: (i, 0)),       # streamed tokens
                pl.BlockSpec((D_in, Hp), lambda i: (0, 0)),       # resident weights
                pl.BlockSpec((Hp, D_out_p), lambda i: (0, 0)),
                pl.BlockSpec((1, D_out_p), lambda i: (0, 0)),     # fused bias
            ],
            out_specs=pl.BlockSpec((TM, D_out_p), lambda i: (i, 0)),
        ),
        compiler_params=pltpu.CompilerParams(
            dimension_semantics=("parallel",),
            vmem_limit_bytes=vmem_limit,
        ),
    )(x2, wd, wu, b)

    if D_out_p != D_out:
        out = out[:, :D_out]                 # single slice only when D_out % 128 != 0
    return out.reshape(*lead, D_out)


def hydra_layer(x, w_down, b_down, w_up, b_up, scale=1.0,
                compute_dtype=jnp.bfloat16):
    """One-shot convenience wrapper (prepares weights every call — prefer
    prepare_hydra_params() + hydra_apply() for repeated use)."""
    params = prepare_hydra_params(w_down, b_down, w_up, b_up, scale, compute_dtype)
    return hydra_apply(x, params)


# ----------------------- init + reference (for testing) ----------------------

def init_hydra_params(key, in_features, hidden_dim, out_features):
    """Matches Hydra_layer.__init__:
       down_proj.weight: xavier_uniform, down_proj.bias: zeros,
       up_proj.weight:   zeros,          up_proj.bias:   zeros.
       Weights stored pre-transposed for row-major x @ W."""
    bound = math.sqrt(6.0 / (in_features + hidden_dim))
    w_down_t = jax.random.uniform(
        key, (hidden_dim, in_features), minval=-bound, maxval=bound,
        dtype=jnp.float32)
    w_down = w_down_t.T                                   # [in_features, hidden_dim]
    b_down = jnp.zeros((hidden_dim,), jnp.float32)
    w_up = jnp.zeros((hidden_dim, out_features), jnp.float32)
    b_up = jnp.zeros((out_features,), jnp.float32)
    return w_down, b_down, w_up, b_up


def _numpy_reference(x, w_down, b_down, w_up, b_up, scale):
    """float64 reference of the PyTorch forward (dropout p=0 is identity)."""
    lead = x.shape[:-1]
    x2 = np.asarray(x, np.float64).reshape(-1, x.shape[-1])
    h = x2 @ np.asarray(w_down, np.float64) + np.asarray(b_down, np.float64)
    y = (h @ np.asarray(w_up, np.float64) + np.asarray(b_up, np.float64)) * scale
    return y.reshape(*lead, -1)


# ------------------------------------ main -----------------------------------

if __name__ == "__main__":
    B, S = 2, 8
    in_features, hidden_dim, out_features = 128, 8, 128
    scale = 0.7

    key = jax.random.PRNGKey(0)
    kx, kw, ku, kbd, kbu, kx2 = jax.random.split(key, 6)
    x = jax.random.normal(kx, (B, S, in_features), dtype=jnp.float32)

    # --- Check 1: module-faithful init (up_proj zero-init -> exact zeros out) ---
    w_down, b_down, w_up, b_up = init_hydra_params(
        kw, in_features, hidden_dim, out_features)
    params0 = prepare_hydra_params(w_down, b_down, w_up, b_up, scale)
    y0 = jax.block_until_ready(hydra_apply(x, params0))
    ref0 = _numpy_reference(x, w_down, b_down, w_up, b_up, scale)
    assert y0.shape == (B, S, out_features)
    assert np.allclose(np.asarray(y0, np.float64), ref0, atol=1e-5, rtol=1e-5)

    # --- Check 2: random (trained-like) weights, f32 and bf16 streaming ---
    w_up_r = 0.05 * jax.random.normal(ku, (hidden_dim, out_features), jnp.float32)
    b_down_r = 0.1 * jax.random.normal(kbd, (hidden_dim,), jnp.float32)
    b_up_r = 0.1 * jax.random.normal(kbu, (out_features,), jnp.float32)
    ref1 = _numpy_reference(x, w_down, b_down_r, w_up_r, b_up_r, scale)

    params_f32 = prepare_hydra_params(w_down, b_down_r, w_up_r, b_up_r, scale,
                                      compute_dtype=jnp.float32)
    y1 = jax.block_until_ready(hydra_apply(x, params_f32))
    assert y1.shape == (B, S, out_features)
    assert np.allclose(np.asarray(y1, np.float64), ref1, atol=3e-2, rtol=3e-2)

    params_bf16 = prepare_hydra_params(w_down, b_down_r, w_up_r, b_up_r, scale)
    y2 = jax.block_until_ready(hydra_apply(x, params_bf16))
    assert np.allclose(np.asarray(y2, np.float64), ref1, atol=3e-2, rtol=3e-2)

    # --- Check 3: ragged token count (partial edge block) + non-128 D_out ---
    B3, S3, D_out3 = 1, 13, 96
    x3 = jax.random.normal(kx2, (B3, S3, in_features), dtype=jnp.float32)
    w_up3 = 0.05 * jax.random.normal(ku, (hidden_dim, D_out3), jnp.float32)
    b_up3 = 0.1 * jax.random.normal(kbu, (D_out3,), jnp.float32)
    params3 = prepare_hydra_params(w_down, b_down_r, w_up3, b_up3, scale)
    y3 = jax.block_until_ready(hydra_apply(x3, params3))
    ref3 = _numpy_reference(x3, w_down, b_down_r, w_up3, b_up3, scale)
    assert y3.shape == (B3, S3, D_out3)
    assert np.allclose(np.asarray(y3, np.float64), ref3, atol=3e-2, rtol=3e-2)

    print("KERNEL_OK")
</pallas_src>

<mosaic_0001>
module attributes {stable_mosaic.version = 11 : i64} {
  func.func @_hydra_kernel(%arg0: i32, %arg1: memref<8x128xf32, #tpu.memory_space<vmem>>, %arg2: memref<128x128xbf16, #tpu.memory_space<vmem>>, %arg3: memref<128x128xbf16, #tpu.memory_space<vmem>>, %arg4: memref<1x128xf32, #tpu.memory_space<vmem>>, %arg5: memref<8x128xf32, #tpu.memory_space<vmem>>) attributes {dimension_semantics = [#tpu.dimension_semantics<parallel>], iteration_bounds = array<i64: 2>, scalar_prefetch = 0 : i64, scratch_operands = 0 : i64, tpu.core_type = #tpu.core_type<tc>, window_params = [{transform_indices = @transform_0, window_bounds = array<i64: 8, 128>}, {pipeline_mode = #tpu.pipeline_mode<synchronous>, transform_indices = @transform_1, window_bounds = array<i64: 128, 128>}, {pipeline_mode = #tpu.pipeline_mode<synchronous>, transform_indices = @transform_2, window_bounds = array<i64: 128, 128>}, {pipeline_mode = #tpu.pipeline_mode<synchronous>, transform_indices = @transform_3, window_bounds = array<i64: 1, 128>}, {transform_indices = @transform_4, window_bounds = array<i64: 8, 128>}]} {
    %c0 = arith.constant 0 : index
    %c0_0 = arith.constant 0 : index
    %0 = vector.load %arg1[%c0, %c0_0] : memref<8x128xf32, #tpu.memory_space<vmem>>, vector<8x128xf32>
    %1 = arith.truncf %0 : vector<8x128xf32> to vector<8x128xbf16>
    %c0_1 = arith.constant 0 : index
    %c0_2 = arith.constant 0 : index
    %2 = vector.load %arg2[%c0_1, %c0_2] : memref<128x128xbf16, #tpu.memory_space<vmem>>, vector<128x128xbf16>
    %cst = arith.constant dense<0.000000e+00> : vector<8x128xf32>
    %3 = tpu.matmul %1, %2, %cst {dimension_numbers = #tpu.dot_dimension_numbers<[1], [0], [0], [1], [0, 0, 1, 1], [], []>} : vector<8x128xbf16>, vector<128x128xbf16>, vector<8x128xf32> -> vector<8x128xf32>
    %4 = arith.truncf %3 : vector<8x128xf32> to vector<8x128xbf16>
    %c0_3 = arith.constant 0 : index
    %c0_4 = arith.constant 0 : index
    %5 = vector.load %arg3[%c0_3, %c0_4] : memref<128x128xbf16, #tpu.memory_space<vmem>>, vector<128x128xbf16>
    %cst_5 = arith.constant dense<0.000000e+00> : vector<8x128xf32>
    %6 = tpu.matmul %4, %5, %cst_5 {dimension_numbers = #tpu.dot_dimension_numbers<[1], [0], [0], [1], [0, 0, 1, 1], [], []>} : vector<8x128xbf16>, vector<128x128xbf16>, vector<8x128xf32> -> vector<8x128xf32>
    %c0_6 = arith.constant 0 : index
    %c0_7 = arith.constant 0 : index
    %7 = vector.load %arg4[%c0_6, %c0_7] : memref<1x128xf32, #tpu.memory_space<vmem>>, vector<1x128xf32>
    %8 = vector.broadcast %7 : vector<1x128xf32> to vector<8x128xf32>
    %9 = arith.addf %6, %8 : vector<8x128xf32>
    %c0_8 = arith.constant 0 : index
    %c0_9 = arith.constant 0 : index
    %10 = vector.load %arg5[%c0_8, %c0_9] : memref<8x128xf32, #tpu.memory_space<vmem>>, vector<8x128xf32>
    tpu.vector_store %arg5[%c0_8, %c0_9], %9 {strides = array<i32>} : memref<8x128xf32, #tpu.memory_space<vmem>>, vector<8x128xf32>,
    return
  }
  func.func @transform_0(%arg0: i32) -> (i32, i32) {
    %c0_i32 = arith.constant 0 : i32
    %c0_i32_0 = arith.constant 0 : i32
    return %arg0, %c0_i32 : i32, i32
  }
  func.func @transform_1(%arg0: i32) -> (i32, i32) {
    %c0_i32 = arith.constant 0 : i32
    %c0_i32_0 = arith.constant 0 : i32
    %c0_i32_1 = arith.constant 0 : i32
    return %c0_i32, %c0_i32_0 : i32, i32
  }
  func.func @transform_2(%arg0: i32) -> (i32, i32) {
    %c0_i32 = arith.constant 0 : i32
    %c0_i32_0 = arith.constant 0 : i32
    %c0_i32_1 = arith.constant 0 : i32
    return %c0_i32, %c0_i32_0 : i32, i32
  }
  func.func @transform_3(%arg0: i32) -> (i32, i32) {
    %c0_i32 = arith.constant 0 : i32
    %c0_i32_0 = arith.constant 0 : i32
    %c0_i32_1 = arith.constant 0 : i32
    return %c0_i32, %c0_i32_0 : i32, i32
  }
  func.func @transform_4(%arg0: i32) -> (i32, i32) {
    %c0_i32 = arith.constant 0 : i32
    %c0_i32_0 = arith.constant 0 : i32
    return %arg0, %c0_i32 : i32, i32
  }
}

</mosaic_0001>

<llo_original>
// kernel: tpu_custom_call.1
$region0: #{tpu_custom_call.1}
  #allocation0 [shape = 'u32[]', space=smem, size = 0x4, offset = 0x4, fixed_abs, tag = 'smem constant byte address 0x4 - core index']
  #allocation1 [shape = 'u32[72,128]{1,0:T(1,128)}', space=vmem, size = 0x9000, scoped, tag = 'internal scratch']
  %s0 = inlined_call_operand.hbm [shape: f32[16,128], index: 0, kind: input, shape index: {}]
  %s1 = inlined_call_operand.hbm [shape: bf16[128,128], index: 1, kind: input, shape index: {}]
  %s2 = inlined_call_operand.hbm [shape: bf16[128,128], index: 2, kind: input, shape index: {}]
  %s3 = inlined_call_operand.vmem [shape: f32[1,128], index: 3, kind: input, shape index: {}]
  %s4 = inlined_call_operand.hbm [shape: f32[16,128], index: 4, kind: output, shape index: {}]
  %s5 = sld [smem:[#allocation0]]
  $region61: #{tpu_custom_call.1} parent=0
    _
  %s7 = ssub.s32 1, %s5
  %s8 = scalar_select 0, %s7, %s5
  $region1: #{tpu_custom_call.1} parent=0
    #allocation2 [shape = 'u8[8192]{0}', space=vmem, size = 0x2000, scoped, tag = 'input window, operand 0']
    #allocation3 [shape = 's32[2]{0}', space=sflag, size = 0x8, scoped, tag = 'scoped memory for tpu_custom_call.1']
    #allocation4 [shape = 's32[2]{0}', space=sflag, size = 0x8, scoped, tag = 'scoped memory for tpu_custom_call.1']
    #allocation5 [shape = 'u8[32768]{0}', space=vmem, size = 0x8000, scoped, tag = 'input window, operand 1, single buffered']
    #allocation6 [shape = 's32[1]{0}', space=sflag, size = 0x4, scoped, tag = 'scoped memory for tpu_custom_call.1']
    #allocation7 [shape = 'u8[32768]{0}', space=vmem, size = 0x8000, scoped, tag = 'input window, operand 2, single buffered']
    #allocation8 [shape = 'u8[8192]{0}', space=vmem, size = 0x2000, scoped, tag = 'output window, operand 0']
    %9 = vsyncpa [#allocation3], 0
    %s10 = scalar_lea.sflag [#allocation3], 1
    %11 = vsyncpa %s10, 0
    %12 = vsyncpa [#allocation6], 0
    %13 = vsyncpa [#allocation4], 0
    %s14 = scalar_lea.sflag [#allocation4], 1
    %15 = vsyncpa %s14, 0
    loop: start=0, step=1, limit=4
    $region2: #{tpu_custom_call.1} parent=1 // loop_pre_header
      _
    $region3: #{tpu_custom_call.1} parent=1 // loop_header
      %s17 = sphi 0, %s21
      %p18 = scmp.ge.s32.totalorder %s17, 4
      %s27 = sphi 0, %s29
      %s30 = sphi 0, %s27
      %s31 = sphi 0, %s30
      %s47 = sphi 0, %s31
      %s51 = sphi 0, %s51
      %s53 = sphi 0, %s51
      %s54 = sphi 0, %s53
      %s68 = sphi 0, %s54
      %s72 = sphi 0, %s72
      %s74 = sphi 0, %s72
      %s75 = sphi 0, %s74
      %s89 = sphi 0, %s75
      %s93 = sphi 0, %s93
      %s95 = sphi 0, %s93
      %s96 = sphi 0, %s95
      %s110 = sphi 0, %s96
      %s116 = sphi 0, %s118
      %s119 = sphi 0, %s116
      %s120 = sphi 0, %s119
      %s136 = sphi 0, %s120
    $region4: #{tpu_custom_call.1} parent=1 // loop_header_branch
      %20 = sbr.rel (%p18) target = $region8
    $region5: #{tpu_custom_call.1} parent=1 // loop_body
      %s22 = ssub.s32 %s17, 1
      %s23 = ssub.s32 %s17, 2
      %s24 = sadd.s32 %s17, 1
      %s25 = ssub.s32 %s17, %s24
      %p26 = scmp.eq.s32.totalorder %s25, 0
      %s28 = sadd.s32 %s27, 1
      %s29 = scalar_select %p26, %s27, %s28
      %p32 = pneg %p26
      %p33 = scmp.eq.s32.totalorder %s17, 1
      %p34 = por %p32, %p33
      %p35 = scmp.ne.s32.totalorder %s27, %s30
      %p36 = scmp.eq.s32.totalorder %s17, 0
      %p37 = por %p35, %p36
      %p38 = scmp.ne.s32.totalorder %s27, %s30
      %p39 = scmp.eq.s32.totalorder %s22, 1
      %p40 = por %p38, %p39
      %p41 = scmp.ne.s32.totalorder %s30, %s31
      %p42 = scmp.eq.s32.totalorder %s22, 0
      %p43 = por %p41, %p42
      %p44 = scmp.ne.s32.totalorder %s30, %s31
      %p45 = scmp.eq.s32.totalorder %s23, 1
      %p46 = por %p44, %p45
      %p48 = scmp.ne.s32.totalorder %s31, %s47
      %p49 = scmp.eq.s32.totalorder %s23, 0
      %p50 = por %p48, %p49
      %s52 = sadd.s32 %s51, 1
      %p55 = scmp.eq.s32.totalorder %s17, 1
      %p56 = scmp.ne.s32.totalorder %s51, %s53
      %p57 = scmp.eq.s32.totalorder %s17, 0
      %p58 = por %p56, %p57
      %p59 = scmp.ne.s32.totalorder %s51, %s53
      %p60 = scmp.eq.s32.totalorder %s22, 1
      %p61 = por %p59, %p60
      %p62 = scmp.ne.s32.totalorder %s53, %s54
      %p63 = scmp.eq.s32.totalorder %s22, 0
      %p64 = por %p62, %p63
      %p65 = scmp.ne.s32.totalorder %s53, %s54
      %p66 = scmp.eq.s32.totalorder %s23, 1
      %p67 = por %p65, %p66
      %p69 = scmp.ne.s32.totalorder %s54, %s68
      %p70 = scmp.eq.s32.totalorder %s23, 0
      %p71 = por %p69, %p70
      %s73 = sadd.s32 %s72, 1
      %p76 = scmp.eq.s32.totalorder %s17, 1
      %p77 = scmp.ne.s32.totalorder %s72, %s74
      %p78 = scmp.eq.s32.totalorder %s17, 0
      %p79 = por %p77, %p78
      %p80 = scmp.ne.s32.totalorder %s72, %s74
      %p81 = scmp.eq.s32.totalorder %s22, 1
      %p82 = por %p80, %p81
      %p83 = scmp.ne.s32.totalorder %s74, %s75
      %p84 = scmp.eq.s32.totalorder %s22, 0
      %p85 = por %p83, %p84
      %p86 = scmp.ne.s32.totalorder %s74, %s75
      %p87 = scmp.eq.s32.totalorder %s23, 1
      %p88 = por %p86, %p87
      %p90 = scmp.ne.s32.totalorder %s75, %s89
      %p91 = scmp.eq.s32.totalorder %s23, 0
      %p92 = por %p90, %p91
      %s94 = sadd.s32 %s93, 1
      %p97 = scmp.eq.s32.totalorder %s17, 1
      %p98 = scmp.ne.s32.totalorder %s93, %s95
      %p99 = scmp.eq.s32.totalorder %s17, 0
      %p100 = por %p98, %p99
      %p101 = scmp.ne.s32.totalorder %s93, %s95
      %p102 = scmp.eq.s32.totalorder %s22, 1
      %p103 = por %p101, %p102
      %p104 = scmp.ne.s32.totalorder %s95, %s96
      %p105 = scmp.eq.s32.totalorder %s22, 0
      %p106 = por %p104, %p105
      %p107 = scmp.ne.s32.totalorder %s95, %s96
      %p108 = scmp.eq.s32.totalorder %s23, 1
      %p109 = por %p107, %p108
      %p111 = scmp.ne.s32.totalorder %s96, %s110
      %p112 = scmp.eq.s32.totalorder %s23, 0
      %p113 = por %p111, %p112
      %s114 = ssub.s32 %s17, %s24
      %p115 = scmp.eq.s32.totalorder %s114, 0
      %s117 = sadd.s32 %s116, 1
      %s118 = scalar_select %p115, %s116, %s117
      %p121 = pneg %p115
      %p122 = scmp.eq.s32.totalorder %s17, 1
      %p123 = por %p121, %p122
      %p124 = scmp.ne.s32.totalorder %s116, %s119
      %p125 = scmp.eq.s32.totalorder %s17, 0
      %p126 = por %p124, %p125
      %p127 = scmp.ne.s32.totalorder %s116, %s119
      %p128 = scmp.eq.s32.totalorder %s22, 1
      %p129 = por %p127, %p128
      %p130 = scmp.ne.s32.totalorder %s119, %s120
      %p131 = scmp.eq.s32.totalorder %s22, 0
      %p132 = por %p130, %p131
      %p133 = scmp.ne.s32.totalorder %s119, %s120
      %p134 = scmp.eq.s32.totalorder %s23, 1
      %p135 = por %p133, %p134
      %p137 = scmp.ne.s32.totalorder %s120, %s136
      %p138 = scmp.eq.s32.totalorder %s23, 0
      %p139 = por %p137, %p138
      %p140 = scmp.le.s32.totalorder 1, %s17
      %p141 = scmp.lt.s32.totalorder %s17, 3
      %p142 = pnand %p140, %p141
      %p143 = pneg %p142
      // Predicated region
      $region9: #{tpu_custom_call.1} parent=5 // pred_check
        _
      $region10: #{tpu_custom_call.1} parent=5 // pred_check_branch
        %145 = sbr.rel (%p142) target = $region12
      $region11: #{tpu_custom_call.1} parent=5 // pred_region
        %s146 = ssub.s32 %s17, 1
        // Predicated region
        $region13: #{tpu_custom_call.1} parent=11 // pred_check
          %p147 = pneg %p64
        $region14: #{tpu_custom_call.1} parent=11 // pred_check_branch
          %149 = sbr.rel (%p147) target = $region16
        $region15: #{tpu_custom_call.1} parent=11 // pred_region
          %151 = vsyncadd [#allocation6], 0
          %s152 = sshll.u32 %s1, 4
          %s153 = int_to_ptr.hbm [resolvable:$true] %s152
          %s154 = sshll.u32 [#allocation5], 4
          %s155 = int_to_ptr.vmem [resolvable:$true] %s154
          %160 = dma.hbm_to_vmem [thread:$0]  %s153, 1024, %s155, [#allocation6], 64, 64, 4
        $region16: #{tpu_custom_call.1} parent=11 // pred_fallthru
          _
        // Predicated region
        $region17: #{tpu_custom_call.1} parent=11 // pred_check
          %p161 = pneg %p85
        $region18: #{tpu_custom_call.1} parent=11 // pred_check_branch
          %163 = sbr.rel (%p161) target = $region20
        $region19: #{tpu_custom_call.1} parent=11 // pred_region
          %165 = vsyncadd [#allocation6], 0
          %s166 = sshll.u32 %s2, 4
          %s167 = int_to_ptr.hbm [resolvable:$true] %s166
          %s168 = sshll.u32 [#allocation7], 4
          %s169 = int_to_ptr.vmem [resolvable:$true] %s168
          %174 = dma.hbm_to_vmem [thread:$0]  %s167, 1024, %s169, [#allocation6], 64, 64, 4
        $region20: #{tpu_custom_call.1} parent=11 // pred_fallthru
          _
        // Predicated region
        $region21: #{tpu_custom_call.1} parent=11 // pred_check
          %p175 = pneg %p106
        $region22: #{tpu_custom_call.1} parent=11 // pred_check_branch
          %177 = sbr.rel (%p175) target = $region24
        $region23: #{tpu_custom_call.1} parent=11 // pred_region
          _
        $region24: #{tpu_custom_call.1} parent=11 // pred_fallthru
          _
      $region12: #{tpu_custom_call.1} parent=5 // pred_fallthru
        _
      %p178 = scmp.lt.s32.totalorder %s17, 2
      // Predicated region
      $region25: #{tpu_custom_call.1} parent=5 // pred_check
        %p179 = pneg %p178
      $region26: #{tpu_custom_call.1} parent=5 // pred_check_branch
        %181 = sbr.rel (%p179) target = $region28
      $region27: #{tpu_custom_call.1} parent=5 // pred_region
        // Predicated region
        $region29: #{tpu_custom_call.1} parent=27 // pred_check
          %p182 = pneg %p37
        $region30: #{tpu_custom_call.1} parent=27 // pred_check_branch
          %184 = sbr.rel (%p182) target = $region32
        $region31: #{tpu_custom_call.1} parent=27 // pred_region
          %s185 = sand.u32 %s27, 1
          %s186 = scalar_lea.sflag [#allocation3], %s185
          %s187 = sand.u32 %s27, 1
          %s188 = smul.addr %s187, 8
          %s189 = scalar_lea.vmem [#allocation2], %s188
          %191 = vsyncadd %s186, 0
          %s192 = smul.addr %s17, 8
          %s193 = scalar_lea.hbm %s0, %s192
          %s195 = sshll.u32 %s193, 4
          %s196 = int_to_ptr.hbm [resolvable:$true] %s195
          %s197 = sshll.u32 %s189, 4
          %s198 = int_to_ptr.vmem [resolvable:$true] %s197
          %200 = dma.hbm_to_vmem [thread:$0]  %s196, 128, %s198, %s186
        $region32: #{tpu_custom_call.1} parent=27 // pred_fallthru
          _
      $region28: #{tpu_custom_call.1} parent=5 // pred_fallthru
        _
      %p201 = scmp.le.s32.totalorder 1, %s17
      %p202 = scmp.lt.s32.totalorder %s17, 3
      %p203 = pnand %p201, %p202
      %p204 = pneg %p203
      // Predicated region
      $region33: #{tpu_custom_call.1} parent=5 // pred_check
        _
      $region34: #{tpu_custom_call.1} parent=5 // pred_check_branch
        %206 = sbr.rel (%p203) target = $region36
      $region35: #{tpu_custom_call.1} parent=5 // pred_region
        %s207 = ssub.s32 %s17, 1
        %s208 = sand.u32 %s30, 1
        %s209 = scalar_lea.sflag [#allocation3], %s208
        %s210 = sand.u32 %s30, 1
        %s211 = smul.addr %s210, 8
        %s212 = scalar_lea.vmem [#allocation2], %s211
        // Predicated region
        $region37: #{tpu_custom_call.1} parent=35 // pred_check
          %p213 = pneg %p43
        $region38: #{tpu_custom_call.1} parent=35 // pred_check_branch
          %215 = sbr.rel (%p213) target = $region40
        $region39: #{tpu_custom_call.1} parent=35 // pred_region
          %217 = dma.done %s209, 128
        $region40: #{tpu_custom_call.1} parent=35 // pred_fallthru
          _
        // Predicated region
        $region41: #{tpu_custom_call.1} parent=35 // pred_check
          %p218 = pneg %p64
        $region42: #{tpu_custom_call.1} parent=35 // pred_check_branch
          %220 = sbr.rel (%p218) target = $region44
        $region43: #{tpu_custom_call.1} parent=35 // pred_region
          %222 = dma.done [#allocation6], 1024
        $region44: #{tpu_custom_call.1} parent=35 // pred_fallthru
          _
        // Predicated region
        $region45: #{tpu_custom_call.1} parent=35 // pred_check
          %p223 = pneg %p85
        $region46: #{tpu_custom_call.1} parent=35 // pred_check_branch
          %225 = sbr.rel (%p223) target = $region48
        $region47: #{tpu_custom_call.1} parent=35 // pred_region
          %227 = dma.done [#allocation6], 1024
        $region48: #{tpu_custom_call.1} parent=35 // pred_fallthru
          _
        %s228 = sand.u32 %s30, 1
        %s229 = scalar_lea.sflag [#allocation3], %s228
        %s230 = sand.u32 %s30, 1
        %s231 = smul.addr %s230, 8
        %s232 = scalar_lea.vmem [#allocation2], %s231
        %p233 = pneg %p43
        %p234 = pneg %p40
        %p235 = pneg %p64
        %p236 = pneg %p61
        %p237 = pneg %p85
        %p238 = pneg %p82
        %p239 = pneg %p106
        %p240 = pneg %p103
        %p241 = pneg %p132
        %p242 = pneg %p129
        %s243 = sand.u32 %s119, 1
        %s244 = scalar_lea.sflag [#allocation4], %s243
        %s245 = sand.u32 %s119, 1
        %s246 = smul.addr %s245, 8
        %s247 = scalar_lea.vmem [#allocation8], %s246
        %v248 = vld [vmem:[%s212] sm:$0xff]
        %v249 = vpack.c.bf16 %v248, %v248
        %v250 = vld [vmem:[#allocation5] sm:$0xf]
        %v251 = vld [vmem:[#allocation5 + $0x4] sm:$0xf]
        %v252 = vld [vmem:[#allocation5 + $0x8] sm:$0xf]
        %v253 = vld [vmem:[#allocation5 + $0xc] sm:$0xf]
        %v254 = vld [vmem:[#allocation5 + $0x10] sm:$0xf]
        %v255 = vld [vmem:[#allocation5 + $0x14] sm:$0xf]
        %v256 = vld [vmem:[#allocation5 + $0x18] sm:$0xf]
        %v257 = vld [vmem:[#allocation5 + $0x1c] sm:$0xf]
        %v258 = vld [vmem:[#allocation5 + $0x20] sm:$0xf]
        %v259 = vld [vmem:[#allocation5 + $0x24] sm:$0xf]
        %v260 = vld [vmem:[#allocation5 + $0x28] sm:$0xf]
        %v261 = vld [vmem:[#allocation5 + $0x2c] sm:$0xf]
        %v262 = vld [vmem:[#allocation5 + $0x30] sm:$0xf]
        %v263 = vld [vmem:[#allocation5 + $0x34] sm:$0xf]
        %v264 = vld [vmem:[#allocation5 + $0x38] sm:$0xf]
        %v265 = vld [vmem:[#allocation5 + $0x3c] sm:$0xf]
        %v282 = vunpack.c.l.b16 %v250
        %v283 = vunpack.c.l.b16 %v251
        %v284 = vunpack.c.l.b16 %v252
        %v285 = vunpack.c.l.b16 %v253
        %v286 = vunpack.c.l.b16 %v254
        %v287 = vunpack.c.l.b16 %v255
        %v288 = vunpack.c.l.b16 %v256
        %v289 = vunpack.c.l.b16 %v257
        %v290 = vunpack.c.l.b16 %v258
        %v291 = vunpack.c.l.b16 %v259
        %v292 = vunpack.c.l.b16 %v260
        %v293 = vunpack.c.l.b16 %v261
        %v294 = vunpack.c.l.b16 %v262
        %v295 = vunpack.c.l.b16 %v263
        %v296 = vunpack.c.l.b16 %v264
        %v297 = vunpack.c.l.b16 %v265
        %v298 = vpack.c.b16 %v283, %v282
        %v299 = vpack.c.b16 %v285, %v284
        %v300 = vpack.c.b16 %v287, %v286
        %v301 = vpack.c.b16 %v289, %v288
        %v302 = vpack.c.b16 %v291, %v290
        %v303 = vpack.c.b16 %v293, %v292
        %v304 = vpack.c.b16 %v295, %v294
        %v305 = vpack.c.b16 %v297, %v296
        %314 = vmatpush.bf16.msra.mxu0 %v305
        %315 = vmatpush.bf16.msra.mxu0 %v304
        %316 = vmatpush.bf16.msra.mxu0 %v303
        %317 = vmatpush.bf16.msra.mxu0 %v302
        %318 = vmatpush.bf16.msra.mxu0 %v301
        %319 = vmatpush.bf16.msra.mxu0 %v300
        %320 = vmatpush.bf16.msra.mxu0 %v299
        %321 = vmatpush.bf16.msra.mxu0 %v298
        %322 = vmatmul.bf16.gmra.mxu0 %v249
        %v323 = vpop.f32.mrf.mxu0
        %v324 = vadd.f32 0.0, %v323
        %v325 = vpop.f32.mrf.mxu0
        %326 = vdwg.mxu0
        %v327 = vpack.c.bf16 %v324, %v324
        %v328 = vld [vmem:[#allocation7] sm:$0xf]
        %v329 = vld [vmem:[#allocation7 + $0x4] sm:$0xf]
        %v330 = vld [vmem:[#allocation7 + $0x8] sm:$0xf]
        %v331 = vld [vmem:[#allocation7 + $0xc] sm:$0xf]
        %v332 = vld [vmem:[#allocation7 + $0x10] sm:$0xf]
        %v333 = vld [vmem:[#allocation7 + $0x14] sm:$0xf]
        %v334 = vld [vmem:[#allocation7 + $0x18] sm:$0xf]
        %v335 = vld [vmem:[#allocation7 + $0x1c] sm:$0xf]
        %v336 = vld [vmem:[#allocation7 + $0x20] sm:$0xf]
        %v337 = vld [vmem:[#allocation7 + $0x24] sm:$0xf]
        %v338 = vld [vmem:[#allocation7 + $0x28] sm:$0xf]
        %v339 = vld [vmem:[#allocation7 + $0x2c] sm:$0xf]
        %v340 = vld [vmem:[#allocation7 + $0x30] sm:$0xf]
        %v341 = vld [vmem:[#allocation7 + $0x34] sm:$0xf]
        %v342 = vld [vmem:[#allocation7 + $0x38] sm:$0xf]
        %v343 = vld [vmem:[#allocation7 + $0x3c] sm:$0xf]
        %v344 = vld [vmem:[%s3] sm:$0x1]
        %v346 = vperm.slane %v344, 0
        %v364 = vunpack.c.l.b16 %v328
        %v365 = vunpack.c.l.b16 %v329
        %v366 = vunpack.c.l.b16 %v330
        %v367 = vunpack.c.l.b16 %v331
        %v368 = vunpack.c.l.b16 %v332
        %v369 = vunpack.c.l.b16 %v333
        %v370 = vunpack.c.l.b16 %v334
        %v371 = vunpack.c.l.b16 %v335
        %v372 = vunpack.c.l.b16 %v336
        %v373 = vunpack.c.l.b16 %v337
        %v374 = vunpack.c.l.b16 %v338
        %v375 = vunpack.c.l.b16 %v339
        %v376 = vunpack.c.l.b16 %v340
        %v377 = vunpack.c.l.b16 %v341
        %v378 = vunpack.c.l.b16 %v342
        %v379 = vunpack.c.l.b16 %v343
        %v380 = vpack.c.b16 %v365, %v364
        %v381 = vpack.c.b16 %v367, %v366
        %v382 = vpack.c.b16 %v369, %v368
        %v383 = vpack.c.b16 %v371, %v370
        %v384 = vpack.c.b16 %v373, %v372
        %v385 = vpack.c.b16 %v375, %v374
        %v386 = vpack.c.b16 %v377, %v376
        %v387 = vpack.c.b16 %v379, %v378
        %396 = vmatpush.bf16.msra.mxu0 %v387
        %397 = vmatpush.bf16.msra.mxu0 %v386
        %398 = vmatpush.bf16.msra.mxu0 %v385
        %399 = vmatpush.bf16.msra.mxu0 %v384
        %400 = vmatpush.bf16.msra.mxu0 %v383
        %401 = vmatpush.bf16.msra.mxu0 %v382
        %402 = vmatpush.bf16.msra.mxu0 %v381
        %403 = vmatpush.bf16.msra.mxu0 %v380
        %404 = vmatmul.bf16.gmra.mxu0 %v327
        %v405 = vpop.f32.mrf.mxu0
        %v406 = vadd.f32 %v346, %v405
        %v407 = vpop.f32.mrf.mxu0
        %408 = vdwg.mxu0
        %409 = vst [vmem:[%s247] sm:$0xff] %v406
        %s410 = sand.u32 %s119, 1
        %s411 = scalar_lea.sflag [#allocation4], %s410
        %s412 = sand.u32 %s119, 1
        %s413 = smul.addr %s412, 8
        %s414 = scalar_lea.vmem [#allocation8], %s413
        // Predicated region
        $region49: #{tpu_custom_call.1} parent=35 // pred_check
          %p415 = pneg %p129
        $region50: #{tpu_custom_call.1} parent=35 // pred_check_branch
          %417 = sbr.rel (%p415) target = $region52
        $region51: #{tpu_custom_call.1} parent=35 // pred_region
          %419 = vsyncadd %s411, 0
          %s420 = smul.addr %s22, 8
          %s421 = scalar_lea.hbm %s4, %s420
          %s423 = sshll.u32 %s414, 4
          %s424 = int_to_ptr.vmem [resolvable:$true] %s423
          %s425 = sshll.u32 %s421, 4
          %s426 = int_to_ptr.hbm [resolvable:$true] %s425
          %428 = dma.vmem_to_hbm [thread:$0]  %s424, 128, %s426, %s411
        $region52: #{tpu_custom_call.1} parent=35 // pred_fallthru
          _
      $region36: #{tpu_custom_call.1} parent=5 // pred_fallthru
        _
      %p429 = scmp.le.s32.totalorder 2, %s17
      // Predicated region
      $region53: #{tpu_custom_call.1} parent=5 // pred_check
        %p430 = pneg %p429
      $region54: #{tpu_custom_call.1} parent=5 // pred_check_branch
        %432 = sbr.rel (%p430) target = $region56
      $region55: #{tpu_custom_call.1} parent=5 // pred_region
        %s433 = ssub.s32 %s17, 2
        // Predicated region
        $region57: #{tpu_custom_call.1} parent=55 // pred_check
          %p434 = pneg %p135
        $region58: #{tpu_custom_call.1} parent=55 // pred_check_branch
          %436 = sbr.rel (%p434) target = $region60
        $region59: #{tpu_custom_call.1} parent=55 // pred_region
          %s437 = sand.u32 %s120, 1
          %s438 = scalar_lea.sflag [#allocation4], %s437
          %s439 = sand.u32 %s120, 1
          %s440 = smul.addr %s439, 8
          %s441 = scalar_lea.vmem [#allocation8], %s440
          %443 = dma.done %s438, 128
        $region60: #{tpu_custom_call.1} parent=55 // pred_fallthru
          _
      $region56: #{tpu_custom_call.1} parent=5 // pred_fallthru
        _
    $region6: #{tpu_custom_call.1} parent=1 // loop_footer
      %s21 = sadd.s32 1, %s17
    $region7: #{tpu_custom_call.1} parent=1 // loop_footer_branch
      %16 = sbr.rel target = $region3
    $region8: #{tpu_custom_call.1} parent=1 // loop_exit
      _
    %444 = vsyncpa [#allocation3], 1
    %s445 = scalar_lea.sflag [#allocation3], 1
    %446 = vsyncpa %s445, 1
    %447 = vsyncpa [#allocation6], 1
    %448 = vsyncpa [#allocation4], 1
    %s449 = scalar_lea.sflag [#allocation4], 1
    %450 = vsyncpa %s449, 1

</llo_original>
